<compile_context>
chip_gen: v6e
topology: v6e:2x2x1
jax: 0.10.0
libtpu: 0.0.40
codegen_flags: <defaults>
</compile_context>

<pallas_src>
import jax
import jax.numpy as jnp
import numpy as np
from jax import lax
from jax.experimental import pallas as pl
from jax.experimental.pallas import tpu as pltpu


def _round_up(x, m):
    return ((x + m - 1) // m) * m


def _vmem_budget_bytes():
    """Generation-aware usable-VMEM budget (~80% of per-core physical VMEM)."""
    try:
        cap = int(pltpu.get_tpu_info().vmem_capacity_bytes)
    except Exception:
        cap = 64 * 1024 * 1024  # conservative: v7x per-TC VMEM
    return int(cap * 0.8)       # ~51 MiB on v7x, ~102 MiB on v5e/v6e


def _tile_bytes(rows, cols, itemsize):
    """VMEM footprint of a (rows, cols) array after (sublane, 128) padding."""
    sublane = 8 * (4 // itemsize)  # f32 -> 8 sublanes, bf16 -> 16 (packed)
    return _round_up(max(rows, 1), sublane) * _round_up(max(cols, 1), 128) * itemsize


def _onehot_vmem_estimate(n_users, n_items, f2, tb, itemsize):
    """Rough per-step working set of the one-hot path."""
    tables = _tile_bytes(f2, n_users, itemsize) + _tile_bytes(f2, n_items, itemsize)
    onehot = (n_users + n_items) * tb * (itemsize + 4)   # one-hot + int32 iota
    gathered = 2 * f2 * tb * 4                           # (F+2, tb) f32 x 2
    ids_out = 3 * 2 * tb * 4                             # double-buffered ids + out
    return tables + onehot + gathered + ids_out


# ---------------------------------------------------------------------------
# Path 1: batched one-hot MXU gather (tables resident in VMEM, small tables).
# ---------------------------------------------------------------------------
def _cf_onehot_kernel(uid_ref, iid_ref, ut_ref, it_ref, out_ref):
    tb = out_ref.shape[1]
    n_users = ut_ref.shape[1]
    n_items = it_ref.shape[1]
    tdtype = ut_ref.dtype

    uids = uid_ref[...]                       # (1, tb) int32
    iids = iid_ref[...]                       # (1, tb) int32

    # One-hot selection matrices with batch on the LANE axis: (n_rows, tb).
    # Out-of-range ids select nothing -> contribute 0 (PyTorch would raise).
    u_oh = (lax.broadcasted_iota(jnp.int32, (n_users, tb), 0) == uids
            ).astype(jnp.float32).astype(tdtype)
    i_oh = (lax.broadcasted_iota(jnp.int32, (n_items, tb), 0) == iids
            ).astype(jnp.float32).astype(tdtype)

    # Exact gather on the MXU: (F+2, n_rows) @ (n_rows, tb) -> (F+2, tb).
    ue = jnp.dot(ut_ref[...], u_oh, preferred_element_type=jnp.float32)
    ie = jnp.dot(it_ref[...], i_oh, preferred_element_type=jnp.float32)

    # Biases live in the two extra factor rows (see bias fold in the wrapper),
    # so this single reduction is dot + user_bias + item_bias + global_bias.
    out_ref[...] = jnp.sum(ue * ie, axis=0, keepdims=True).astype(out_ref.dtype)


def _cf_forward_onehot(user_ids, item_ids, user_aug_t, item_aug_t, *, tb,
                       vmem_limit):
    B = user_ids.shape[0]
    num_tiles = pl.cdiv(B, tb)
    Bp = num_tiles * tb
    pad = Bp - B
    uid = jnp.pad(user_ids.astype(jnp.int32), (0, pad)).reshape(num_tiles, tb)
    iid = jnp.pad(item_ids.astype(jnp.int32), (0, pad)).reshape(num_tiles, tb)

    grid_spec = pltpu.PrefetchScalarGridSpec(
        num_scalar_prefetch=0,
        grid=(num_tiles,),
        in_specs=[
            pl.BlockSpec((1, tb), lambda t: (t, 0)),   # user id tile
            pl.BlockSpec((1, tb), lambda t: (t, 0)),   # item id tile
            # Grid-invariant tables: whole-array VMEM residency (single copy,
            # not double-buffered by the block pipeline).
            pl.BlockSpec(memory_space=pltpu.MemorySpace.VMEM),
            pl.BlockSpec(memory_space=pltpu.MemorySpace.VMEM),
        ],
        out_specs=pl.BlockSpec((1, tb), lambda t: (t, 0)),
    )

    out = pl.pallas_call(
        _cf_onehot_kernel,
        out_shape=jax.ShapeDtypeStruct((num_tiles, tb), jnp.float32),
        grid_spec=grid_spec,
        compiler_params=pltpu.CompilerParams(
            dimension_semantics=("parallel",),
            vmem_limit_bytes=vmem_limit),
    )(uid, iid, user_aug_t, item_aug_t)

    return out.reshape(Bp)[:B]


# ---------------------------------------------------------------------------
# Path 2: scalar-prefetch per-row DMA gather fallback (large tables).
# ---------------------------------------------------------------------------
def _cf_gather_kernel(uids_sref, iids_sref, urow_ref, irow_ref, out_ref):
    # urow_ref / irow_ref are the (1, F+2) rows selected by the
    # scalar-prefetch index_maps; the prefetch refs themselves are unused here.
    del uids_sref, iids_sref
    prod = urow_ref[...].astype(jnp.float32) * irow_ref[...].astype(jnp.float32)
    out_ref[...] = jnp.sum(prod, axis=1, keepdims=True).astype(out_ref.dtype)


def _cf_forward_gather(user_ids, item_ids, user_aug, item_aug, *, vmem_limit):
    # TODO(synk): batch TB rows per grid step with a manual double-buffered
    # DMA gather to amortize the ~0.35 us/step grid overhead; this per-row
    # version is the O(B*F) fallback used when tables are too large for the
    # one-hot path (VMEM or VPU bound).
    B = user_ids.shape[0]
    f2 = user_aug.shape[1]

    uid = user_ids.astype(jnp.int32)
    iid = item_ids.astype(jnp.int32)

    grid_spec = pltpu.PrefetchScalarGridSpec(
        num_scalar_prefetch=2,
        grid=(B,),
        in_specs=[
            pl.BlockSpec((1, f2), lambda b, u, i: (u[b], 0)),   # user row
            pl.BlockSpec((1, f2), lambda b, u, i: (i[b], 0)),   # item row
        ],
        out_specs=pl.BlockSpec((1, 1), lambda b, u, i: (b, 0)),
    )

    out = pl.pallas_call(
        _cf_gather_kernel,
        out_shape=jax.ShapeDtypeStruct((B, 1), jnp.float32),
        grid_spec=grid_spec,
        compiler_params=pltpu.CompilerParams(
            dimension_semantics=("arbitrary",),
            vmem_limit_bytes=vmem_limit),
    )(uid, iid, user_aug, item_aug)

    return out.reshape(B)


# ---------------------------------------------------------------------------
# Public entry point.
# ---------------------------------------------------------------------------
def cf_forward(user_ids, item_ids, user_emb, item_emb, user_bias, item_bias,
               global_bias, *, table_dtype=jnp.bfloat16, tb=None,
               max_onehot_rows=8192, force_path=None):
    """Pallas forward for CollaborativeFilteringRecommender. Returns (B,) f32."""
    B = user_ids.shape[0]
    n_users, F = user_emb.shape
    n_items = item_emb.shape[0]

    gb = jnp.asarray(global_bias, jnp.float32).reshape(-1)[0]
    ub = jnp.asarray(user_bias, jnp.float32).reshape(n_users, 1)
    ib = jnp.asarray(item_bias, jnp.float32).reshape(n_items, 1)

    # Bias fold: append two factor rows so that
    #   sum_f user_aug[u, f] * item_aug[i, f]
    #     = dot(user_emb[u], item_emb[i]) + user_bias[u] + global_bias + item_bias[i]
    user_aug = jnp.concatenate(
        [user_emb.astype(jnp.float32), ub + gb,
         jnp.ones((n_users, 1), jnp.float32)], axis=1).astype(table_dtype)
    item_aug = jnp.concatenate(
        [item_emb.astype(jnp.float32), jnp.ones((n_items, 1), jnp.float32),
         ib], axis=1).astype(table_dtype)
    f2 = F + 2
    itemsize = jnp.dtype(table_dtype).itemsize

    budget = _vmem_budget_bytes()

    # Generation/size-aware batch-tile choice (largest tb whose working set,
    # including one-hot intermediates, fits the VMEM budget).
    b_cap = _round_up(max(B, 1), 128)
    if tb is None:
        for cand in (2048, 1024, 512, 256, 128):
            t = min(cand, b_cap)
            if _onehot_vmem_estimate(n_users, n_items, f2, t, itemsize) <= budget:
                tb = t
                break
    else:
        tb = min(max(128, _round_up(tb, 128)), b_cap)

    # One-hot path only while the tables are small enough that its
    # O((n_users+n_items) * tb) VPU/VMEM cost is cheap; otherwise row gather.
    use_onehot = (n_users + n_items) <= max_onehot_rows and tb is not None
    if force_path == "onehot":
        use_onehot = True
        if tb is None:
            tb = min(512, b_cap)
    elif force_path == "gather":
        use_onehot = False

    if use_onehot:
        # Factor-major layout so the gathered result is (F+2, tb) with the
        # batch on the lane axis (layout plumbing done once, outside kernel).
        return _cf_forward_onehot(user_ids, item_ids, user_aug.T, item_aug.T,
                                  tb=tb, vmem_limit=budget)
    return _cf_forward_gather(user_ids, item_ids, user_aug, item_aug,
                              vmem_limit=budget)


if __name__ == "__main__":
    # ----- deterministic parameter init (matches nn.init.normal_(std=0.1)) -----
    n_users, n_items, n_factors = 16, 24, 32
    B = 8

    key = jax.random.PRNGKey(0)
    k1, k2, k3, k4, k5, k6 = jax.random.split(key, 6)

    user_emb = 0.1 * jax.random.normal(k1, (n_users, n_factors), dtype=jnp.float32)
    item_emb = 0.1 * jax.random.normal(k2, (n_items, n_factors), dtype=jnp.float32)
    user_bias = 0.1 * jax.random.normal(k3, (n_users, 1), dtype=jnp.float32)
    item_bias = 0.1 * jax.random.normal(k4, (n_items, 1), dtype=jnp.float32)
    global_bias = jnp.zeros((1,), dtype=jnp.float32)   # nn.Parameter(torch.zeros(1))

    user_ids = jax.random.randint(k5, (B,), 0, n_users, dtype=jnp.int32)
    item_ids = jax.random.randint(k6, (B,), 0, n_items, dtype=jnp.int32)

    # ----- pure-JAX reference (same semantics as the PyTorch forward) -----
    ref = (jnp.sum(user_emb[user_ids] * item_emb[item_ids], axis=1)
           + user_bias[user_ids, 0] + item_bias[item_ids, 0] + global_bias[0])
    ref = np.asarray(jax.block_until_ready(ref))

    def _check(name, got, tol):
        got = np.asarray(got)
        if not np.allclose(got, ref, atol=tol, rtol=tol):
            raise AssertionError(
                f"{name} mismatch (max abs err {np.max(np.abs(got - ref)):.3e}):\n"
                f" got={got}\n ref={ref}")

    # 1) One-hot MXU path, f32 tables: exact gather, tight tolerance.
    out_f32 = jax.block_until_ready(cf_forward(
        user_ids, item_ids, user_emb, item_emb, user_bias, item_bias,
        global_bias, table_dtype=jnp.float32, force_path="onehot"))
    _check("onehot_f32", out_f32, 1e-5)

    # 2) One-hot MXU path, bf16 tables (default): only bf16 table rounding.
    out_bf16 = jax.block_until_ready(cf_forward(
        user_ids, item_ids, user_emb, item_emb, user_bias, item_bias,
        global_bias, table_dtype=jnp.bfloat16, force_path="onehot"))
    _check("onehot_bf16", out_bf16, 5e-3)

    # 3) Scalar-prefetch row-gather fallback (large-table regime), f32.
    out_gather = jax.block_until_ready(cf_forward(
        user_ids, item_ids, user_emb, item_emb, user_bias, item_bias,
        global_bias, table_dtype=jnp.float32, force_path="gather"))
    _check("row_gather", out_gather, 1e-5)

    print("KERNEL_OK")
</pallas_src>

<mosaic_0001>
module attributes {stable_mosaic.version = 11 : i64} {
  func.func @_cf_onehot_kernel(%arg0: i32, %arg1: memref<1x128xi32, #tpu.memory_space<vmem>>, %arg2: memref<1x128xi32, #tpu.memory_space<vmem>>, %arg3: memref<34x16xf32, #tpu.memory_space<vmem>>, %arg4: memref<34x24xf32, #tpu.memory_space<vmem>>, %arg5: memref<1x128xf32, #tpu.memory_space<vmem>>) attributes {dimension_semantics = [#tpu.dimension_semantics<parallel>], iteration_bounds = array<i64: 1>, scalar_prefetch = 0 : i64, scratch_operands = 0 : i64, tpu.core_type = #tpu.core_type<tc>, window_params = [{transform_indices = @transform_0, window_bounds = array<i64: 1, 128>}, {transform_indices = @transform_1, window_bounds = array<i64: 1, 128>}, {pipeline_mode = #tpu.pipeline_mode<synchronous>, transform_indices = @transform_2, window_bounds = array<i64: 34, 16>}, {pipeline_mode = #tpu.pipeline_mode<synchronous>, transform_indices = @transform_3, window_bounds = array<i64: 34, 24>}, {transform_indices = @transform_4, window_bounds = array<i64: 1, 128>}]} {
    %c0 = arith.constant 0 : index
    %c0_0 = arith.constant 0 : index
    %0 = vector.load %arg1[%c0, %c0_0] : memref<1x128xi32, #tpu.memory_space<vmem>>, vector<1x128xi32>
    %c0_1 = arith.constant 0 : index
    %c0_2 = arith.constant 0 : index
    %1 = vector.load %arg2[%c0_1, %c0_2] : memref<1x128xi32, #tpu.memory_space<vmem>>, vector<1x128xi32>
    %2 = tpu.iota {dimensions = array<i32: 0>} : vector<16x128xi32>
    %3 = vector.broadcast %0 : vector<1x128xi32> to vector<16x128xi32>
    %4 = arith.cmpi eq, %2, %3 : vector<16x128xi32>
    %5 = arith.extui %4 : vector<16x128xi1> to vector<16x128xi32>
    %6 = arith.sitofp %5 : vector<16x128xi32> to vector<16x128xf32>
    %7 = tpu.iota {dimensions = array<i32: 0>} : vector<24x128xi32>
    %8 = vector.broadcast %1 : vector<1x128xi32> to vector<24x128xi32>
    %9 = arith.cmpi eq, %7, %8 : vector<24x128xi32>
    %10 = arith.extui %9 : vector<24x128xi1> to vector<24x128xi32>
    %11 = arith.sitofp %10 : vector<24x128xi32> to vector<24x128xf32>
    %c0_3 = arith.constant 0 : index
    %c0_4 = arith.constant 0 : index
    %12 = vector.load %arg3[%c0_3, %c0_4] : memref<34x16xf32, #tpu.memory_space<vmem>>, vector<34x16xf32>
    %cst = arith.constant dense<0.000000e+00> : vector<34x128xf32>
    %13 = tpu.matmul %12, %6, %cst {dimension_numbers = #tpu.dot_dimension_numbers<[1], [0], [0], [1], [0, 0, 1, 1], [], []>} : vector<34x16xf32>, vector<16x128xf32>, vector<34x128xf32> -> vector<34x128xf32>
    %c0_5 = arith.constant 0 : index
    %c0_6 = arith.constant 0 : index
    %14 = vector.load %arg4[%c0_5, %c0_6] : memref<34x24xf32, #tpu.memory_space<vmem>>, vector<34x24xf32>
    %cst_7 = arith.constant dense<0.000000e+00> : vector<34x128xf32>
    %15 = tpu.matmul %14, %11, %cst_7 {dimension_numbers = #tpu.dot_dimension_numbers<[1], [0], [0], [1], [0, 0, 1, 1], [], []>} : vector<34x24xf32>, vector<24x128xf32>, vector<34x128xf32> -> vector<34x128xf32>
    %16 = arith.mulf %13, %15 : vector<34x128xf32>
    %cst_8 = arith.constant dense<0.000000e+00> : vector<128xf32>
    %17 = vector.multi_reduction <add>, %16, %cst_8 [0] : vector<34x128xf32> to vector<128xf32>
    %18 = vector.shape_cast %17 : vector<128xf32> to vector<1x128xf32>
    %c0_9 = arith.constant 0 : index
    %c0_10 = arith.constant 0 : index
    %19 = vector.load %arg5[%c0_9, %c0_10] : memref<1x128xf32, #tpu.memory_space<vmem>>, vector<1x128xf32>
    tpu.vector_store %arg5[%c0_9, %c0_10], %18 {strides = array<i32>} : memref<1x128xf32, #tpu.memory_space<vmem>>, vector<1x128xf32>,
    return
  }
  func.func @transform_0(%arg0: i32) -> (i32, i32) {
    %c0_i32 = arith.constant 0 : i32
    %c0_i32_0 = arith.constant 0 : i32
    return %arg0, %c0_i32 : i32, i32
  }
  func.func @transform_1(%arg0: i32) -> (i32, i32) {
    %c0_i32 = arith.constant 0 : i32
    %c0_i32_0 = arith.constant 0 : i32
    return %arg0, %c0_i32 : i32, i32
  }
  func.func @transform_2(%arg0: i32) -> (i32, i32) {
    %c0_i32 = arith.constant 0 : i32
    %c0_i32_0 = arith.constant 0 : i32
    %c0_i32_1 = arith.constant 0 : i32
    return %c0_i32, %c0_i32_0 : i32, i32
  }
  func.func @transform_3(%arg0: i32) -> (i32, i32) {
    %c0_i32 = arith.constant 0 : i32
    %c0_i32_0 = arith.constant 0 : i32
    %c0_i32_1 = arith.constant 0 : i32
    return %c0_i32, %c0_i32_0 : i32, i32
  }
  func.func @transform_4(%arg0: i32) -> (i32, i32) {
    %c0_i32 = arith.constant 0 : i32
    %c0_i32_0 = arith.constant 0 : i32
    return %arg0, %c0_i32 : i32, i32
  }
}

</mosaic_0001>

<llo_original>
// kernel: tpu_custom_call.1
$region0: #{tpu_custom_call.1}
  #allocation0 [shape = 'u32[]', space=smem, size = 0x4, offset = 0x4, fixed_abs, tag = 'smem constant byte address 0x4 - core index']
  #allocation1 [shape = 'u32[144,128]{1,0:T(1,128)}', space=vmem, size = 0x12000, scoped, tag = 'internal scratch']
  %s0 = inlined_call_operand.vmem [shape: s32[1,128], index: 0, kind: input, shape index: {}]
  %s1 = inlined_call_operand.vmem [shape: s32[1,128], index: 1, kind: input, shape index: {}]
  %s2 = inlined_call_operand.vmem [shape: f32[34,16], index: 2, kind: input, shape index: {}]
  %s3 = inlined_call_operand.vmem [shape: f32[34,24], index: 3, kind: input, shape index: {}]
  %s4 = inlined_call_operand.hbm [shape: f32[1,128], index: 4, kind: output, shape index: {}]
  %s5 = sld [smem:[#allocation0]]
  $region26: #{tpu_custom_call.1} parent=0
    _
  %s7 = ssub.s32 1, %s5
  %s8 = scalar_select 0, %s7, %s5
  $region1: #{tpu_custom_call.1} parent=0
    #allocation2 [shape = 'u8[512]{0}', space=vmem, size = 0x400, scoped, tag = 'output window, operand 0, single buffered']
    #allocation3 [shape = 's32[1]{0}', space=sflag, size = 0x4, scoped, tag = 'scoped memory for tpu_custom_call.1']
    %9 = vsyncpa [#allocation3], 0
    // Predicated region
    $region2: #{tpu_custom_call.1} parent=1 // pred_check
      _
    $region3: #{tpu_custom_call.1} parent=1 // pred_check_branch
      %11 = sbr.rel (0) target = $region5
    $region4: #{tpu_custom_call.1} parent=1 // pred_region
      _
    $region5: #{tpu_custom_call.1} parent=1 // pred_fallthru
      _
    // Predicated region
    $region6: #{tpu_custom_call.1} parent=1 // pred_check
      _
    $region7: #{tpu_custom_call.1} parent=1 // pred_check_branch
      %13 = sbr.rel (0) target = $region9
    $region8: #{tpu_custom_call.1} parent=1 // pred_region
      _
    $region9: #{tpu_custom_call.1} parent=1 // pred_fallthru
      _
    // Predicated region
    $region10: #{tpu_custom_call.1} parent=1 // pred_check
      _
    $region11: #{tpu_custom_call.1} parent=1 // pred_check_branch
      %15 = sbr.rel (0) target = $region13
    $region12: #{tpu_custom_call.1} parent=1 // pred_region
      _
    $region13: #{tpu_custom_call.1} parent=1 // pred_fallthru
      _
    // Predicated region
    $region14: #{tpu_custom_call.1} parent=1 // pred_check
      _
    $region15: #{tpu_custom_call.1} parent=1 // pred_check_branch
      %17 = sbr.rel (0) target = $region17
    $region16: #{tpu_custom_call.1} parent=1 // pred_region
      _
    $region17: #{tpu_custom_call.1} parent=1 // pred_fallthru
      _
    %v18 = vld [vmem:[%s0] sm:$0x1]
    %v19 = vld [vmem:[%s1] sm:$0x1]
    %v20 = vlaneseq
    %v21 = vshrl.u32 %v20, 7
    %v22 = vadd.s32 %v21, 8
    %v23 = vlaneseq
    %v24 = vshrl.u32 %v23, 7
    %v25 = vsub.s32 0, %v24
    %v26 = vrot.slane %v18, %v25
    %vm27 = vcmp.eq.s32.totalorder %v21, %v26
    %vm28 = vcmp.eq.s32.totalorder %v22, %v26
    %v29 = vsel %vm27, 1, 0
    %v30 = vsel %vm28, 1, 0
    %v31 = vcvt.s32.f32 %v29
    %v32 = vcvt.s32.f32 %v30
    %v33 = vadd.s32 %v21, 16
    %v34 = vlaneseq
    %v35 = vshrl.u32 %v34, 7
    %v36 = vsub.s32 0, %v35
    %v37 = vrot.slane %v19, %v36
    %vm38 = vcmp.eq.s32.totalorder %v21, %v37
    %vm39 = vcmp.eq.s32.totalorder %v22, %v37
    %vm40 = vcmp.eq.s32.totalorder %v33, %v37
    %v41 = vsel %vm38, 1, 0
    %v42 = vsel %vm39, 1, 0
    %v43 = vsel %vm40, 1, 0
    %v44 = vcvt.s32.f32 %v41
    %v45 = vcvt.s32.f32 %v42
    %v46 = vcvt.s32.f32 %v43
    %v47 = vld [vmem:[%s2] sm:$0xff]
    %v48 = vld [vmem:[%s2 + $0x8] sm:$0xff]
    %v49 = vld [vmem:[%s2 + $0x10] sm:$0xff]
    %v50 = vld [vmem:[%s2 + $0x18] sm:$0xff]
    %v51 = vld [vmem:[%s2 + $0x20] sm:$0x3]
    %vm52 = vcmask 130048
    %v54 = vsel %vm52, %v47, 0
    %v57 = vsel %vm52, %v48, 0
    %v60 = vsel %vm52, %v49, 0
    %v63 = vsel %vm52, %v50, 0
    %v66 = vsel %vm52, %v51, 0
    %68 = vmatprep.subr.mxu0 0.0
    %69 = vmatpush1.msra.mxu0 0.0
    %70 = vmatprep.subr.mxu0 0.0
    %71 = vmatpush1.msra.mxu0 0.0
    %72 = vmatprep.subr.mxu0 0.0
    %73 = vmatpush1.msra.mxu0 0.0
    %74 = vmatprep.subr.mxu0 0.0
    %75 = vmatpush1.msra.mxu0 0.0
    %76 = vmatprep.subr.mxu0 0.0
    %77 = vmatpush1.msra.mxu0 0.0
    %78 = vmatprep.subr.mxu0 0.0
    %79 = vmatpush1.msra.mxu0 0.0
    %80 = vmatprep.subr.mxu0 0.0
    %81 = vmatpush1.msra.mxu0 0.0
    %82 = vmatprep.subr.mxu0 0.0
    %83 = vmatpush1.msra.mxu0 0.0
    %84 = vmatprep.subr.mxu0 0.0
    %85 = vmatpush1.msra.mxu0 0.0
    %86 = vmatprep.subr.mxu0 0.0
    %87 = vmatpush1.msra.mxu0 0.0
    %88 = vmatprep.subr.mxu0 0.0
    %89 = vmatpush1.msra.mxu0 0.0
    %90 = vmatprep.subr.mxu0 0.0
    %91 = vmatpush1.msra.mxu0 0.0
    %92 = vmatprep.subr.mxu0 0.0
    %93 = vmatpush1.msra.mxu0 0.0
    %94 = vmatprep.subr.mxu0 0.0
    %95 = vmatpush1.msra.mxu0 0.0
    %96 = vmatprep.subr.mxu0 0.0
    %97 = vmatpush1.msra.mxu0 %v32
    %98 = vmatprep.subr.mxu0 0.0
    %99 = vmatpush1.msra.mxu0 %v31
    %100 = vmatprep.subr.mxu0 0.0
    %101 = vmatpush2.msra.mxu0 0.0
    %102 = vmatprep.subr.mxu0 0.0
    %103 = vmatpush2.msra.mxu0 0.0
    %104 = vmatprep.subr.mxu0 0.0
    %105 = vmatpush2.msra.mxu0 0.0
    %106 = vmatprep.subr.mxu0 0.0
    %107 = vmatpush2.msra.mxu0 0.0
    %108 = vmatprep.subr.mxu0 0.0
    %109 = vmatpush2.msra.mxu0 0.0
    %110 = vmatprep.subr.mxu0 0.0
    %111 = vmatpush2.msra.mxu0 0.0
    %112 = vmatprep.subr.mxu0 0.0
    %113 = vmatpush2.msra.mxu0 0.0
    %114 = vmatprep.subr.mxu0 0.0
    %115 = vmatpush2.msra.mxu0 0.0
    %116 = vmatprep.subr.mxu0 0.0
    %117 = vmatpush2.msra.mxu0 0.0
    %118 = vmatprep.subr.mxu0 0.0
    %119 = vmatpush2.msra.mxu0 0.0
    %120 = vmatprep.subr.mxu0 0.0
    %121 = vmatpush2.msra.mxu0 0.0
    %122 = vmatprep.subr.mxu0 0.0
    %123 = vmatpush2.msra.mxu0 0.0
    %124 = vmatprep.subr.mxu0 0.0
    %125 = vmatpush2.msra.mxu0 0.0
    %126 = vmatprep.subr.mxu0 0.0
    %127 = vmatpush2.msra.mxu0 0.0
    %128 = vmatprep.subr.mxu0 0.0
    %129 = vmatpush2.msra.mxu0 0.0
    %130 = vmatprep.subr.mxu0 0.0
    %131 = vmatpush2.msra.mxu0 0.0
    %132 = vmatprep.mubr.f32.mxu0 0.0
    %133 = vmatmul.mubr.f32.gmra.mxu0 %v54
    %v134 = vpop.f32.mrf.mxu0
    %v135 = vadd.f32 0.0, %v134
    %v136 = vpop.f32.mrf.mxu0
    %137 = vmatprep.mubr.f32.mxu0 0.0
    %138 = vmatmul.mubr.f32.gmra.mxu0 %v57
    %v139 = vpop.f32.mrf.mxu0
    %v140 = vadd.f32 0.0, %v139
    %v141 = vpop.f32.mrf.mxu0
    %142 = vmatprep.mubr.f32.mxu0 0.0
    %143 = vmatmul.mubr.f32.gmra.mxu0 %v60
    %v144 = vpop.f32.mrf.mxu0
    %v145 = vadd.f32 0.0, %v144
    %v146 = vpop.f32.mrf.mxu0
    %147 = vmatprep.mubr.f32.mxu0 0.0
    %148 = vmatmul.mubr.f32.gmra.mxu0 %v63
    %v149 = vpop.f32.mrf.mxu0
    %v150 = vadd.f32 0.0, %v149
    %v151 = vpop.f32.mrf.mxu0
    %152 = vmatprep.mubr.f32.mxu0 0.0
    %153 = vmatmul.mubr.f32.gmra.mxu0 %v66
    %v154 = vpop.f32.mrf.mxu0
    %v155 = vadd.f32 0.0, %v154
    %v156 = vpop.f32.mrf.mxu0
    %157 = vdwg.mxu0
    %v158 = vld [vmem:[%s3] sm:$0xff]
    %v159 = vld [vmem:[%s3 + $0x8] sm:$0xff]
    %v160 = vld [vmem:[%s3 + $0x10] sm:$0xff]
    %v161 = vld [vmem:[%s3 + $0x18] sm:$0xff]
    %v162 = vld [vmem:[%s3 + $0x20] sm:$0x3]
    %vm163 = vcmask 195584
    %v165 = vsel %vm163, %v158, 0
    %v168 = vsel %vm163, %v159, 0
    %v171 = vsel %vm163, %v160, 0
    %v174 = vsel %vm163, %v161, 0
    %v177 = vsel %vm163, %v162, 0
    %179 = vmatprep.subr.mxu0 0.0
    %180 = vmatpush1.msra.mxu0 0.0
    %181 = vmatprep.subr.mxu0 0.0
    %182 = vmatpush1.msra.mxu0 0.0
    %183 = vmatprep.subr.mxu0 0.0
    %184 = vmatpush1.msra.mxu0 0.0
    %185 = vmatprep.subr.mxu0 0.0
    %186 = vmatpush1.msra.mxu0 0.0
    %187 = vmatprep.subr.mxu0 0.0
    %188 = vmatpush1.msra.mxu0 0.0
    %189 = vmatprep.subr.mxu0 0.0
    %190 = vmatpush1.msra.mxu0 0.0
    %191 = vmatprep.subr.mxu0 0.0
    %192 = vmatpush1.msra.mxu0 0.0
    %193 = vmatprep.subr.mxu0 0.0
    %194 = vmatpush1.msra.mxu0 0.0
    %195 = vmatprep.subr.mxu0 0.0
    %196 = vmatpush1.msra.mxu0 0.0
    %197 = vmatprep.subr.mxu0 0.0
    %198 = vmatpush1.msra.mxu0 0.0
    %199 = vmatprep.subr.mxu0 0.0
    %200 = vmatpush1.msra.mxu0 0.0
    %201 = vmatprep.subr.mxu0 0.0
    %202 = vmatpush1.msra.mxu0 0.0
    %203 = vmatprep.subr.mxu0 0.0
    %204 = vmatpush1.msra.mxu0 0.0
    %205 = vmatprep.subr.mxu0 0.0
    %206 = vmatpush1.msra.mxu0 %v46
    %207 = vmatprep.subr.mxu0 0.0
    %208 = vmatpush1.msra.mxu0 %v45
    %209 = vmatprep.subr.mxu0 0.0
    %210 = vmatpush1.msra.mxu0 %v44
    %211 = vmatprep.subr.mxu0 0.0
    %212 = vmatpush2.msra.mxu0 0.0
    %213 = vmatprep.subr.mxu0 0.0
    %214 = vmatpush2.msra.mxu0 0.0
    %215 = vmatprep.subr.mxu0 0.0
    %216 = vmatpush2.msra.mxu0 0.0
    %217 = vmatprep.subr.mxu0 0.0
    %218 = vmatpush2.msra.mxu0 0.0
    %219 = vmatprep.subr.mxu0 0.0
    %220 = vmatpush2.msra.mxu0 0.0
    %221 = vmatprep.subr.mxu0 0.0
    %222 = vmatpush2.msra.mxu0 0.0
    %223 = vmatprep.subr.mxu0 0.0
    %224 = vmatpush2.msra.mxu0 0.0
    %225 = vmatprep.subr.mxu0 0.0
    %226 = vmatpush2.msra.mxu0 0.0
    %227 = vmatprep.subr.mxu0 0.0
    %228 = vmatpush2.msra.mxu0 0.0
    %229 = vmatprep.subr.mxu0 0.0
    %230 = vmatpush2.msra.mxu0 0.0
    %231 = vmatprep.subr.mxu0 0.0
    %232 = vmatpush2.msra.mxu0 0.0
    %233 = vmatprep.subr.mxu0 0.0
    %234 = vmatpush2.msra.mxu0 0.0
    %235 = vmatprep.subr.mxu0 0.0
    %236 = vmatpush2.msra.mxu0 0.0
    %237 = vmatprep.subr.mxu0 0.0
    %238 = vmatpush2.msra.mxu0 0.0
    %239 = vmatprep.subr.mxu0 0.0
    %240 = vmatpush2.msra.mxu0 0.0
    %241 = vmatprep.subr.mxu0 0.0
    %242 = vmatpush2.msra.mxu0 0.0
    %243 = vmatprep.mubr.f32.mxu0 0.0
    %244 = vmatmul.mubr.f32.gmra.mxu0 %v165
    %v245 = vpop.f32.mrf.mxu0
    %v246 = vadd.f32 0.0, %v245
    %v247 = vpop.f32.mrf.mxu0
    %248 = vmatprep.mubr.f32.mxu0 0.0
    %249 = vmatmul.mubr.f32.gmra.mxu0 %v168
    %v250 = vpop.f32.mrf.mxu0
    %v251 = vadd.f32 0.0, %v250
    %v252 = vpop.f32.mrf.mxu0
    %253 = vmatprep.mubr.f32.mxu0 0.0
    %254 = vmatmul.mubr.f32.gmra.mxu0 %v171
    %v255 = vpop.f32.mrf.mxu0
    %v256 = vadd.f32 0.0, %v255
    %v257 = vpop.f32.mrf.mxu0
    %258 = vmatprep.mubr.f32.mxu0 0.0
    %259 = vmatmul.mubr.f32.gmra.mxu0 %v174
    %v260 = vpop.f32.mrf.mxu0
    %v261 = vadd.f32 0.0, %v260
    %v262 = vpop.f32.mrf.mxu0
    %263 = vmatprep.mubr.f32.mxu0 0.0
    %264 = vmatmul.mubr.f32.gmra.mxu0 %v177
    %v265 = vpop.f32.mrf.mxu0
    %v266 = vadd.f32 0.0, %v265
    %v267 = vpop.f32.mrf.mxu0
    %268 = vdwg.mxu0
    %v269 = vmul.f32 %v135, %v246
    %v270 = vmul.f32 %v140, %v251
    %v271 = vmul.f32 %v145, %v256
    %v272 = vmul.f32 %v150, %v261
    %v273 = vmul.f32 %v155, %v266
    %v274 = vadd.f32 %v269, %v270
    %v275 = vadd.f32 %v274, %v271
    %v276 = vadd.f32 %v275, %v272
    %vm277 = vcmask 1041408
    %v278 = vsel %vm277, %v273, 0.0
    %v279 = vadd.f32 %v276, %v278
    %v280 = vrot.slane %v279, 4
    %v281 = vadd.f32 %v279, %v280
    %v282 = vrot.slane %v281, 2
    %v283 = vadd.f32 %v281, %v282
    %v284 = vrot.slane %v283, 1
    %v285 = vadd.f32 %v283, %v284
    %286 = vst [vmem:[#allocation2] sm:$0x1] %v285
    // Predicated region
    $region18: #{tpu_custom_call.1} parent=1 // pred_check
      _
    $region19: #{tpu_custom_call.1} parent=1 // pred_check_branch
      %288 = sbr.rel (0) target = $region21
    $region20: #{tpu_custom_call.1} parent=1 // pred_region
      %s290 = ssub.s32 16, 16
      %291 = vsyncadd [#allocation3], %s290
      %s293 = sshll.u32 [#allocation2], 4
      %s294 = int_to_ptr.vmem [resolvable:$true] %s293
      %296 = dma.vmem_to_hbm [thread:$0]  %s294, 16, %s4, [#allocation3]
    $region21: #{tpu_custom_call.1} parent=1 // pred_fallthru
      _
    // Predicated region
    $region22: #{tpu_custom_call.1} parent=1 // pred_check
      _
    $region23: #{tpu_custom_call.1} parent=1 // pred_check_branch
      %298 = sbr.rel (0) target = $region25
    $region24: #{tpu_custom_call.1} parent=1 // pred_region
      %299 = dma.done [#allocation3], 16
    $region25: #{tpu_custom_call.1} parent=1 // pred_fallthru
      _
    %300 = vsyncpa [#allocation3], 1

</llo_original>
